<compile_context>
chip_gen: v7x
topology: tpu7x:2x2x1
jax: 0.10.0
libtpu: 0.0.40
codegen_flags: <defaults>
</compile_context>

<pallas_src>
import jax
import jax.numpy as jnp
from jax.experimental import pallas as pl
from jax.experimental.pallas import tpu as pltpu


# --------------------------------------------------------------------------
# Kernel 1: policy + critic backbones and the value head, per row tile.
# --------------------------------------------------------------------------
def _backbone_kernel(
    xp_ref,    # (TM, H)   bf16  policy embeddings (row tile)
    xv_ref,    # (TM, H)   bf16  value-model embeddings (row tile)
    wp_ref,    # (H, H)    bf16  policy backbone weight
    bp_ref,    # (1, H)    f32   policy backbone bias
    wv_ref,    # (H, H)    bf16  critic backbone weight
    bv_ref,    # (1, H)    f32   critic backbone bias
    ws_ref,    # (H, 128)  bf16  value score weight, lane-padded (col 0 real)
    bs_ref,    # (1, 1)    f32   value score bias (SMEM scalar)
    hp_ref,    # (TM, H)   bf16  out: policy hidden state
    vlog_ref,  # (TM, 128) f32   out: lane-dense value logits (col 0 real)
):
    # Policy backbone: bf16 x bf16 MXU dot, f32 accumulate, f32 tanh on VPU/EUP.
    hp = jnp.tanh(
        jnp.dot(xp_ref[...], wp_ref[...], preferred_element_type=jnp.float32)
        + bp_ref[...]
    )
    hp_ref[...] = hp.astype(hp_ref.dtype)

    # Critic backbone + score head.  The score weight is padded to a full
    # 128-lane tile so the matmul and the store are lane-dense/unmasked.
    hv = jnp.tanh(
        jnp.dot(xv_ref[...], wv_ref[...], preferred_element_type=jnp.float32)
        + bv_ref[...]
    )
    vlog_ref[...] = (
        jnp.dot(hv.astype(ws_ref.dtype), ws_ref[...],
                preferred_element_type=jnp.float32)
        + bs_ref[0, 0]
    ).astype(vlog_ref.dtype)


# --------------------------------------------------------------------------
# Kernel 2: lm_head GEMM.  Vocab axis is OUTERMOST so each wlm tile is fetched
# from HBM exactly once and stays resident across the inner row loop.
# --------------------------------------------------------------------------
def _lm_head_kernel(hp_ref, wlm_ref, plog_ref):
    plog_ref[...] = jnp.dot(
        hp_ref[...], wlm_ref[...], preferred_element_type=jnp.float32
    ).astype(plog_ref.dtype)


def _pick_tile(requested, total, quantum):
    """Largest legal tile <= requested that divides `total` and is a multiple of
    `quantum`; falls back to the full dimension (always a legal block shape)."""
    t = (min(requested, total) // quantum) * quantum
    while t >= quantum:
        if total % t == 0:
            return t
        t -= quantum
    return total


def prepare_params(params):
    """One-time (outside the per-call path) dtype casts + score-weight padding."""
    bf16 = jnp.bfloat16
    H = params["wp"].shape[0]
    ws_pad = jnp.zeros((H, 128), bf16).at[:, 0].set(params["ws"][:, 0].astype(bf16))
    return {
        "emb_policy": params["emb_policy"].astype(bf16),
        "emb_value": params["emb_value"].astype(bf16),
        "wp": params["wp"].astype(bf16),
        "wv": params["wv"].astype(bf16),
        "wlm": params["wlm"].astype(bf16),
        "bp": params["bp"].astype(jnp.float32),
        "bv": params["bv"].astype(jnp.float32),
        "ws_pad": ws_pad,
        "bs": params["bs"].astype(jnp.float32).reshape(1, 1),
    }


def policy_and_value_forward(input_ids, prepared, *, tm=256, tn=512,
                             logits_dtype=jnp.bfloat16):
    """Returns (policy_logits (B,S,V) in `logits_dtype`, value_logits (B,S,1) f32)."""
    B, S = input_ids.shape
    H = prepared["wp"].shape[0]
    V = prepared["wlm"].shape[1]
    BS = B * S

    # Row tile: multiple of the bf16 sublane pack (16); vocab tile: multiple of 128.
    tm = _pick_tile(tm, BS, 16)
    tn = _pick_tile(tn, V, 128)

    # Glue: embedding gather stays in plain JAX (tables already bf16, no cast).
    xp = prepared["emb_policy"][input_ids].reshape(BS, H)
    xv = prepared["emb_value"][input_ids].reshape(BS, H)

    # ---- Kernel 1: backbones + value head, grid over row tiles only. ----
    hp, vlog_pad = pl.pallas_call(
        _backbone_kernel,
        out_shape=(
            jax.ShapeDtypeStruct((BS, H), jnp.bfloat16),
            jax.ShapeDtypeStruct((BS, 128), jnp.float32),
        ),
        grid=(BS // tm,),
        in_specs=[
            pl.BlockSpec((tm, H), lambda i: (i, 0)),       # xp
            pl.BlockSpec((tm, H), lambda i: (i, 0)),       # xv
            pl.BlockSpec((H, H), lambda i: (0, 0)),        # wp
            pl.BlockSpec((1, H), lambda i: (0, 0)),        # bp
            pl.BlockSpec((H, H), lambda i: (0, 0)),        # wv
            pl.BlockSpec((1, H), lambda i: (0, 0)),        # bv
            pl.BlockSpec((H, 128), lambda i: (0, 0)),      # ws_pad
            pl.BlockSpec(memory_space=pltpu.MemorySpace.SMEM),  # bs scalar
        ],
        out_specs=(
            pl.BlockSpec((tm, H), lambda i: (i, 0)),       # hp
            pl.BlockSpec((tm, 128), lambda i: (i, 0)),     # vlog (lane-dense)
        ),
        compiler_params=pltpu.CompilerParams(
            dimension_semantics=("parallel",),
        ),
    )(xp, xv, prepared["wp"], prepared["bp"], prepared["wv"], prepared["bv"],
      prepared["ws_pad"], prepared["bs"])

    # ---- Kernel 2: lm_head GEMM.  grid = (vocab tiles, row tiles): vocab axis
    # outermost -> wlm streamed from HBM exactly once; both axes independent
    # (distinct output tiles), so both are "parallel" for megacore sharding.
    # VMEM footprint: 2*(tm*H + H*tn)*2B + 2*tm*tn*sizeof(logits) — comfortably
    # under the scoped default even on v7x for tm=256, tn=512, H<=2048.
    plog = pl.pallas_call(
        _lm_head_kernel,
        out_shape=jax.ShapeDtypeStruct((BS, V), logits_dtype),
        grid=(V // tn, BS // tm),
        in_specs=[
            pl.BlockSpec((tm, H), lambda v, r: (r, 0)),    # hp (row tile)
            pl.BlockSpec((H, tn), lambda v, r: (0, v)),    # wlm (vocab tile)
        ],
        out_specs=pl.BlockSpec((tm, tn), lambda v, r: (r, v)),
        compiler_params=pltpu.CompilerParams(
            dimension_semantics=("parallel", "parallel"),
        ),
    )(hp, prepared["wlm"])

    vlog = vlog_pad[:, :1]
    return plog.reshape(B, S, V), vlog.reshape(B, S, 1)


def init_params(key, vocab, hidden):
    ks = jax.random.split(key, 9)
    scale = 0.02
    return {
        "emb_policy": scale * jax.random.normal(ks[0], (vocab, hidden), jnp.float32),
        "emb_value": scale * jax.random.normal(ks[1], (vocab, hidden), jnp.float32),
        "wp": scale * jax.random.normal(ks[2], (hidden, hidden), jnp.float32),
        "bp": scale * jax.random.normal(ks[3], (1, hidden), jnp.float32),
        "wlm": scale * jax.random.normal(ks[4], (hidden, vocab), jnp.float32),
        "wv": scale * jax.random.normal(ks[5], (hidden, hidden), jnp.float32),
        "bv": scale * jax.random.normal(ks[6], (1, hidden), jnp.float32),
        "ws": scale * jax.random.normal(ks[7], (hidden, 1), jnp.float32),
        "bs": scale * jax.random.normal(ks[8], (1, 1), jnp.float32),
    }


def reference_forward(input_ids, prepared):
    """Plain-JAX reference with the same bf16-in / f32-accumulate recipe."""
    B, S = input_ids.shape
    H = prepared["wp"].shape[0]
    xp = prepared["emb_policy"][input_ids].reshape(B * S, H)
    xv = prepared["emb_value"][input_ids].reshape(B * S, H)
    hp = jnp.tanh(
        jnp.dot(xp, prepared["wp"], preferred_element_type=jnp.float32)
        + prepared["bp"]
    )
    plog = jnp.dot(hp.astype(jnp.bfloat16), prepared["wlm"],
                   preferred_element_type=jnp.float32)
    hv = jnp.tanh(
        jnp.dot(xv, prepared["wv"], preferred_element_type=jnp.float32)
        + prepared["bv"]
    )
    vlog = (jnp.dot(hv.astype(jnp.bfloat16), prepared["ws_pad"][:, :1],
                    preferred_element_type=jnp.float32) + prepared["bs"][0, 0])
    return plog.reshape(B, S, -1), vlog.reshape(B, S, 1)


if __name__ == "__main__":
    # Small but grid-exercising shapes: BS=32 rows, V=256 vocab (2 vocab tiles
    # after clamping tn to 256... tn=256 here, 1 row tile), H=128 lane-aligned.
    B, S, H, V = 2, 16, 128, 256
    key = jax.random.PRNGKey(0)
    k_params, k_ids = jax.random.split(key)

    params = init_params(k_params, V, H)
    prepared = prepare_params(params)          # one-time casts / padding
    input_ids = jax.random.randint(k_ids, (B, S), 0, V, dtype=jnp.int32)

    fwd = jax.jit(policy_and_value_forward)
    plog, vlog = fwd(input_ids, prepared)
    jax.block_until_ready((plog, vlog))

    # Sanity check against the plain-JAX reference.
    plog_ref, vlog_ref = reference_forward(input_ids, prepared)
    assert plog.shape == (B, S, V) and vlog.shape == (B, S, 1)
    assert jnp.allclose(plog.astype(jnp.float32), plog_ref, atol=5e-3, rtol=5e-2), \
        float(jnp.max(jnp.abs(plog.astype(jnp.float32) - plog_ref)))
    assert jnp.allclose(vlog, vlog_ref, atol=2e-3, rtol=2e-2), \
        float(jnp.max(jnp.abs(vlog - vlog_ref)))

    print("KERNEL_OK")
</pallas_src>

<mosaic_0001>
module attributes {stable_mosaic.version = 11 : i64} {
  func.func @_backbone_kernel(%arg0: i32, %arg1: memref<32x128xbf16, #tpu.memory_space<vmem>>, %arg2: memref<32x128xbf16, #tpu.memory_space<vmem>>, %arg3: memref<128x128xbf16, #tpu.memory_space<vmem>>, %arg4: memref<1x128xf32, #tpu.memory_space<vmem>>, %arg5: memref<128x128xbf16, #tpu.memory_space<vmem>>, %arg6: memref<1x128xf32, #tpu.memory_space<vmem>>, %arg7: memref<128x128xbf16, #tpu.memory_space<vmem>>, %arg8: memref<1x1xf32, #tpu.memory_space<smem>>, %arg9: memref<32x128xbf16, #tpu.memory_space<vmem>>, %arg10: memref<32x128xf32, #tpu.memory_space<vmem>>) attributes {dimension_semantics = [#tpu.dimension_semantics<parallel>], iteration_bounds = array<i64: 1>, scalar_prefetch = 0 : i64, scratch_operands = 0 : i64, tpu.core_type = #tpu.core_type<tc>, window_params = [{transform_indices = @transform_0, window_bounds = array<i64: 32, 128>}, {transform_indices = @transform_1, window_bounds = array<i64: 32, 128>}, {pipeline_mode = #tpu.pipeline_mode<synchronous>, transform_indices = @transform_2, window_bounds = array<i64: 128, 128>}, {pipeline_mode = #tpu.pipeline_mode<synchronous>, transform_indices = @transform_3, window_bounds = array<i64: 1, 128>}, {pipeline_mode = #tpu.pipeline_mode<synchronous>, transform_indices = @transform_4, window_bounds = array<i64: 128, 128>}, {pipeline_mode = #tpu.pipeline_mode<synchronous>, transform_indices = @transform_5, window_bounds = array<i64: 1, 128>}, {pipeline_mode = #tpu.pipeline_mode<synchronous>, transform_indices = @transform_6, window_bounds = array<i64: 128, 128>}, {transform_indices = @transform_7, window_bounds = array<i64: 1, 1>}, {transform_indices = @transform_8, window_bounds = array<i64: 32, 128>}, {transform_indices = @transform_9, window_bounds = array<i64: 32, 128>}]} {
    %c0 = arith.constant 0 : index
    %c0_0 = arith.constant 0 : index
    %0 = vector.load %arg1[%c0, %c0_0] : memref<32x128xbf16, #tpu.memory_space<vmem>>, vector<32x128xbf16>
    %c0_1 = arith.constant 0 : index
    %c0_2 = arith.constant 0 : index
    %1 = vector.load %arg3[%c0_1, %c0_2] : memref<128x128xbf16, #tpu.memory_space<vmem>>, vector<128x128xbf16>
    %cst = arith.constant dense<0.000000e+00> : vector<32x128xf32>
    %2 = tpu.matmul %0, %1, %cst {dimension_numbers = #tpu.dot_dimension_numbers<[1], [0], [0], [1], [0, 0, 1, 1], [], []>} : vector<32x128xbf16>, vector<128x128xbf16>, vector<32x128xf32> -> vector<32x128xf32>
    %c0_3 = arith.constant 0 : index
    %c0_4 = arith.constant 0 : index
    %3 = vector.load %arg4[%c0_3, %c0_4] : memref<1x128xf32, #tpu.memory_space<vmem>>, vector<1x128xf32>
    %4 = vector.broadcast %3 : vector<1x128xf32> to vector<32x128xf32>
    %5 = arith.addf %2, %4 : vector<32x128xf32>
    %6 = math.tanh %5 : vector<32x128xf32>
    %7 = arith.truncf %6 : vector<32x128xf32> to vector<32x128xbf16>
    %c0_5 = arith.constant 0 : index
    %c0_6 = arith.constant 0 : index
    %8 = vector.load %arg9[%c0_5, %c0_6] : memref<32x128xbf16, #tpu.memory_space<vmem>>, vector<32x128xbf16>
    tpu.vector_store %arg9[%c0_5, %c0_6], %7 {strides = array<i32>} : memref<32x128xbf16, #tpu.memory_space<vmem>>, vector<32x128xbf16>,
    %c0_7 = arith.constant 0 : index
    %c0_8 = arith.constant 0 : index
    %9 = vector.load %arg2[%c0_7, %c0_8] : memref<32x128xbf16, #tpu.memory_space<vmem>>, vector<32x128xbf16>
    %c0_9 = arith.constant 0 : index
    %c0_10 = arith.constant 0 : index
    %10 = vector.load %arg5[%c0_9, %c0_10] : memref<128x128xbf16, #tpu.memory_space<vmem>>, vector<128x128xbf16>
    %cst_11 = arith.constant dense<0.000000e+00> : vector<32x128xf32>
    %11 = tpu.matmul %9, %10, %cst_11 {dimension_numbers = #tpu.dot_dimension_numbers<[1], [0], [0], [1], [0, 0, 1, 1], [], []>} : vector<32x128xbf16>, vector<128x128xbf16>, vector<32x128xf32> -> vector<32x128xf32>
    %c0_12 = arith.constant 0 : index
    %c0_13 = arith.constant 0 : index
    %12 = vector.load %arg6[%c0_12, %c0_13] : memref<1x128xf32, #tpu.memory_space<vmem>>, vector<1x128xf32>
    %13 = vector.broadcast %12 : vector<1x128xf32> to vector<32x128xf32>
    %14 = arith.addf %11, %13 : vector<32x128xf32>
    %15 = math.tanh %14 : vector<32x128xf32>
    %16 = arith.truncf %15 : vector<32x128xf32> to vector<32x128xbf16>
    %c0_14 = arith.constant 0 : index
    %c0_15 = arith.constant 0 : index
    %17 = vector.load %arg7[%c0_14, %c0_15] : memref<128x128xbf16, #tpu.memory_space<vmem>>, vector<128x128xbf16>
    %cst_16 = arith.constant dense<0.000000e+00> : vector<32x128xf32>
    %18 = tpu.matmul %16, %17, %cst_16 {dimension_numbers = #tpu.dot_dimension_numbers<[1], [0], [0], [1], [0, 0, 1, 1], [], []>} : vector<32x128xbf16>, vector<128x128xbf16>, vector<32x128xf32> -> vector<32x128xf32>
    %c0_17 = arith.constant 0 : index
    %c0_18 = arith.constant 0 : index
    %19 = memref.load %arg8[%c0_17, %c0_18] : memref<1x1xf32, #tpu.memory_space<smem>>
    %20 = vector.broadcast %19 : f32 to vector<32x128xf32>
    %21 = arith.addf %18, %20 : vector<32x128xf32>
    %c0_19 = arith.constant 0 : index
    %c0_20 = arith.constant 0 : index
    %22 = vector.load %arg10[%c0_19, %c0_20] : memref<32x128xf32, #tpu.memory_space<vmem>>, vector<32x128xf32>
    tpu.vector_store %arg10[%c0_19, %c0_20], %21 {strides = array<i32>} : memref<32x128xf32, #tpu.memory_space<vmem>>, vector<32x128xf32>,
    return
  }
  func.func @transform_0(%arg0: i32) -> (i32, i32) {
    %c0_i32 = arith.constant 0 : i32
    %c0_i32_0 = arith.constant 0 : i32
    return %arg0, %c0_i32 : i32, i32
  }
  func.func @transform_1(%arg0: i32) -> (i32, i32) {
    %c0_i32 = arith.constant 0 : i32
    %c0_i32_0 = arith.constant 0 : i32
    return %arg0, %c0_i32 : i32, i32
  }
  func.func @transform_2(%arg0: i32) -> (i32, i32) {
    %c0_i32 = arith.constant 0 : i32
    %c0_i32_0 = arith.constant 0 : i32
    %c0_i32_1 = arith.constant 0 : i32
    return %c0_i32, %c0_i32_0 : i32, i32
  }
  func.func @transform_3(%arg0: i32) -> (i32, i32) {
    %c0_i32 = arith.constant 0 : i32
    %c0_i32_0 = arith.constant 0 : i32
    %c0_i32_1 = arith.constant 0 : i32
    return %c0_i32, %c0_i32_0 : i32, i32
  }
  func.func @transform_4(%arg0: i32) -> (i32, i32) {
    %c0_i32 = arith.constant 0 : i32
    %c0_i32_0 = arith.constant 0 : i32
    %c0_i32_1 = arith.constant 0 : i32
    return %c0_i32, %c0_i32_0 : i32, i32
  }
  func.func @transform_5(%arg0: i32) -> (i32, i32) {
    %c0_i32 = arith.constant 0 : i32
    %c0_i32_0 = arith.constant 0 : i32
    %c0_i32_1 = arith.constant 0 : i32
    return %c0_i32, %c0_i32_0 : i32, i32
  }
  func.func @transform_6(%arg0: i32) -> (i32, i32) {
    %c0_i32 = arith.constant 0 : i32
    %c0_i32_0 = arith.constant 0 : i32
    %c0_i32_1 = arith.constant 0 : i32
    return %c0_i32, %c0_i32_0 : i32, i32
  }
  func.func @transform_7(%arg0: i32) -> (i32, i32) {
    %c0_i32 = arith.constant 0 : i32
    %c0_i32_0 = arith.constant 0 : i32
    %c0_i32_1 = arith.constant 0 : i32
    return %c0_i32, %c0_i32_0 : i32, i32
  }
  func.func @transform_8(%arg0: i32) -> (i32, i32) {
    %c0_i32 = arith.constant 0 : i32
    %c0_i32_0 = arith.constant 0 : i32
    return %arg0, %c0_i32 : i32, i32
  }
  func.func @transform_9(%arg0: i32) -> (i32, i32) {
    %c0_i32 = arith.constant 0 : i32
    %c0_i32_0 = arith.constant 0 : i32
    return %arg0, %c0_i32 : i32, i32
  }
}

module attributes {stable_mosaic.version = 11 : i64} {
  func.func @_lm_head_kernel(%arg0: i32, %arg1: i32, %arg2: memref<32x128xbf16, #tpu.memory_space<vmem>>, %arg3: memref<128x256xbf16, #tpu.memory_space<vmem>>, %arg4: memref<32x256xbf16, #tpu.memory_space<vmem>>) attributes {dimension_semantics = [#tpu.dimension_semantics<parallel>, #tpu.dimension_semantics<parallel>], iteration_bounds = array<i64: 1, 1>, scalar_prefetch = 0 : i64, scratch_operands = 0 : i64, tpu.core_type = #tpu.core_type<tc>, window_params = [{transform_indices = @transform_0, window_bounds = array<i64: 32, 128>}, {transform_indices = @transform_1, window_bounds = array<i64: 128, 256>}, {transform_indices = @transform_2, window_bounds = array<i64: 32, 256>}]} {
    %c0 = arith.constant 0 : index
    %c0_0 = arith.constant 0 : index
    %0 = vector.load %arg2[%c0, %c0_0] : memref<32x128xbf16, #tpu.memory_space<vmem>>, vector<32x128xbf16>
    %c0_1 = arith.constant 0 : index
    %c0_2 = arith.constant 0 : index
    %1 = vector.load %arg3[%c0_1, %c0_2] : memref<128x256xbf16, #tpu.memory_space<vmem>>, vector<128x256xbf16>
    %cst = arith.constant dense<0.000000e+00> : vector<32x256xf32>
    %2 = tpu.matmul %0, %1, %cst {dimension_numbers = #tpu.dot_dimension_numbers<[1], [0], [0], [1], [0, 0, 1, 1], [], []>} : vector<32x128xbf16>, vector<128x256xbf16>, vector<32x256xf32> -> vector<32x256xf32>
    %3 = arith.truncf %2 : vector<32x256xf32> to vector<32x256xbf16>
    %c0_3 = arith.constant 0 : index
    %c0_4 = arith.constant 0 : index
    %4 = vector.load %arg4[%c0_3, %c0_4] : memref<32x256xbf16, #tpu.memory_space<vmem>>, vector<32x256xbf16>
    tpu.vector_store %arg4[%c0_3, %c0_4], %3 {strides = array<i32>} : memref<32x256xbf16, #tpu.memory_space<vmem>>, vector<32x256xbf16>,
    return
  }
  func.func @transform_0(%arg0: i32, %arg1: i32) -> (i32, i32) {
    %c0_i32 = arith.constant 0 : i32
    %c0_i32_0 = arith.constant 0 : i32
    return %arg1, %c0_i32 : i32, i32
  }
  func.func @transform_1(%arg0: i32, %arg1: i32) -> (i32, i32) {
    %c0_i32 = arith.constant 0 : i32
    %c0_i32_0 = arith.constant 0 : i32
    return %c0_i32, %arg0 : i32, i32
  }
  func.func @transform_2(%arg0: i32, %arg1: i32) -> (i32, i32) {
    %c0_i32 = arith.constant 0 : i32
    return %arg1, %arg0 : i32, i32
  }
}

</mosaic_0001>

<llo_original>
// kernel: policy_and_value_forward.3
$region0: #{policy_and_value_forward.3}
  #allocation0 [shape = 'u32[]', space=smem, size = 0x4, offset = 0x4, fixed_abs, tag = 'smem constant byte address 0x4 - core index']
  #allocation1 [shape = 'u32[144,128]{1,0:T(1,128)}', space=vmem, size = 0x12000, scoped, tag = 'internal scratch']
  %s0 = inlined_call_operand.vmem [shape: bf16[32,128], index: 0, kind: input, shape index: {}]
  %s1 = inlined_call_operand.vmem [shape: bf16[128,256], index: 1, kind: input, shape index: {}]
  %s2 = inlined_call_operand.hbm [shape: bf16[32,256], index: 2, kind: output, shape index: {}]
  %s3 = sld [smem:[#allocation0]]
  $region18: #{policy_and_value_forward.3} parent=0
    _
  %s5 = ssub.s32 1, %s3
  %s6 = scalar_select 0, %s5, %s3
  $region1: #{policy_and_value_forward.3} parent=0
    #allocation2 [shape = 'u8[16384]{0}', space=vmem, size = 0x4000, scoped, tag = 'output window, operand 0, single buffered']
    #allocation3 [shape = 's32[1]{0}', space=sflag, size = 0x4, scoped, tag = 'scoped memory for policy_and_value_forward.3']
    %7 = vsyncpa [#allocation3], 0
    // Predicated region
    $region2: #{policy_and_value_forward.3} parent=1 // pred_check
      _
    $region3: #{policy_and_value_forward.3} parent=1 // pred_check_branch
      %9 = sbr.rel (0) target = $region5
    $region4: #{policy_and_value_forward.3} parent=1 // pred_region
      _
    $region5: #{policy_and_value_forward.3} parent=1 // pred_fallthru
      _
    // Predicated region
    $region6: #{policy_and_value_forward.3} parent=1 // pred_check
      _
    $region7: #{policy_and_value_forward.3} parent=1 // pred_check_branch
      %11 = sbr.rel (0) target = $region9
    $region8: #{policy_and_value_forward.3} parent=1 // pred_region
      _
    $region9: #{policy_and_value_forward.3} parent=1 // pred_fallthru
      _
    %v13 = vld [vmem:[%s0] sm:$0xf]
    %v14 = vld [vmem:[%s0 + $0x4] sm:$0xf]
    %v15 = vld [vmem:[%s0 + $0x8] sm:$0xf]
    %v16 = vld [vmem:[%s0 + $0xc] sm:$0xf]
    %v17 = vld [vmem:[%s1] sm:$0xff]
    %v18 = vld [vmem:[%s1 + $0x8] sm:$0xff]
    %v19 = vld [vmem:[%s1 + $0x10] sm:$0xff]
    %v20 = vld [vmem:[%s1 + $0x18] sm:$0xff]
    %v21 = vld [vmem:[%s1 + $0x20] sm:$0xff]
    %v22 = vld [vmem:[%s1 + $0x28] sm:$0xff]
    %v23 = vld [vmem:[%s1 + $0x30] sm:$0xff]
    %v24 = vld [vmem:[%s1 + $0x38] sm:$0xff]
    %v25 = vld [vmem:[%s1 + $0x40] sm:$0xff]
    %v26 = vld [vmem:[%s1 + $0x48] sm:$0xff]
    %v27 = vld [vmem:[%s1 + $0x50] sm:$0xff]
    %v28 = vld [vmem:[%s1 + $0x58] sm:$0xff]
    %v29 = vld [vmem:[%s1 + $0x60] sm:$0xff]
    %v30 = vld [vmem:[%s1 + $0x68] sm:$0xff]
    %v31 = vld [vmem:[%s1 + $0x70] sm:$0xff]
    %v32 = vld [vmem:[%s1 + $0x78] sm:$0xff]
    %v37 = vunpack.c.l.b16 %v13
    %v38 = vunpack.c.l.b16 %v14
    %v39 = vunpack.c.l.b16 %v15
    %v40 = vunpack.c.l.b16 %v16
    %v41 = vpack.c.b16 %v38, %v37
    %v42 = vpack.c.b16 %v40, %v39
    %v61 = vunpack.c.l.b16 %v17
    %v62 = vunpack.c.h.b16 %v17
    %v63 = vunpack.c.l.b16 %v18
    %v64 = vunpack.c.h.b16 %v18
    %v65 = vunpack.c.l.b16 %v19
    %v66 = vunpack.c.h.b16 %v19
    %v67 = vunpack.c.l.b16 %v20
    %v68 = vunpack.c.h.b16 %v20
    %v69 = vunpack.c.l.b16 %v21
    %v70 = vunpack.c.h.b16 %v21
    %v71 = vunpack.c.l.b16 %v22
    %v72 = vunpack.c.h.b16 %v22
    %v73 = vunpack.c.l.b16 %v23
    %v74 = vunpack.c.h.b16 %v23
    %v75 = vunpack.c.l.b16 %v24
    %v76 = vunpack.c.h.b16 %v24
    %v77 = vunpack.c.l.b16 %v25
    %v78 = vunpack.c.h.b16 %v25
    %v79 = vunpack.c.l.b16 %v26
    %v80 = vunpack.c.h.b16 %v26
    %v81 = vunpack.c.l.b16 %v27
    %v82 = vunpack.c.h.b16 %v27
    %v83 = vunpack.c.l.b16 %v28
    %v84 = vunpack.c.h.b16 %v28
    %v85 = vunpack.c.l.b16 %v29
    %v86 = vunpack.c.h.b16 %v29
    %v87 = vunpack.c.l.b16 %v30
    %v88 = vunpack.c.h.b16 %v30
    %v89 = vunpack.c.l.b16 %v31
    %v90 = vunpack.c.h.b16 %v31
    %v91 = vunpack.c.l.b16 %v32
    %v92 = vunpack.c.h.b16 %v32
    %v93 = vpack.c.b16 %v63, %v61
    %v94 = vpack.c.b16 %v64, %v62
    %v95 = vpack.c.b16 %v67, %v65
    %v96 = vpack.c.b16 %v68, %v66
    %v97 = vpack.c.b16 %v71, %v69
    %v98 = vpack.c.b16 %v72, %v70
    %v99 = vpack.c.b16 %v75, %v73
    %v100 = vpack.c.b16 %v76, %v74
    %v101 = vpack.c.b16 %v79, %v77
    %v102 = vpack.c.b16 %v80, %v78
    %v103 = vpack.c.b16 %v83, %v81
    %v104 = vpack.c.b16 %v84, %v82
    %v105 = vpack.c.b16 %v87, %v85
    %v106 = vpack.c.b16 %v88, %v86
    %v107 = vpack.c.b16 %v91, %v89
    %v108 = vpack.c.b16 %v92, %v90
    %125 = vmatprep.subr.bf16.mxu0 %v94
    %126 = vmatpush1.bf16.msra.mxu0 %v93
    %127 = vmatprep.subr.bf16.mxu0 %v96
    %128 = vmatpush1.bf16.msra.mxu0 %v95
    %129 = vmatprep.subr.bf16.mxu0 %v98
    %130 = vmatpush1.bf16.msra.mxu0 %v97
    %131 = vmatprep.subr.bf16.mxu0 %v100
    %132 = vmatpush1.bf16.msra.mxu0 %v99
    %133 = vmatprep.subr.bf16.mxu0 %v102
    %134 = vmatpush1.bf16.msra.mxu0 %v101
    %135 = vmatprep.subr.bf16.mxu0 %v104
    %136 = vmatpush1.bf16.msra.mxu0 %v103
    %137 = vmatprep.subr.bf16.mxu0 %v106
    %138 = vmatpush1.bf16.msra.mxu0 %v105
    %139 = vmatprep.subr.bf16.mxu0 %v108
    %140 = vmatpush1.bf16.msra.mxu0 %v107
    %141 = vmatprep.subr.bf16.mxu0 0
    %142 = vmatpush1.bf16.msra.mxu0 0
    %143 = vmatprep.subr.bf16.mxu0 0
    %144 = vmatpush1.bf16.msra.mxu0 0
    %145 = vmatprep.subr.bf16.mxu0 0
    %146 = vmatpush1.bf16.msra.mxu0 0
    %147 = vmatprep.subr.bf16.mxu0 0
    %148 = vmatpush1.bf16.msra.mxu0 0
    %149 = vmatprep.subr.bf16.mxu0 0
    %150 = vmatpush1.bf16.msra.mxu0 0
    %151 = vmatprep.subr.bf16.mxu0 0
    %152 = vmatpush1.bf16.msra.mxu0 0
    %153 = vmatprep.subr.bf16.mxu0 0
    %154 = vmatpush1.bf16.msra.mxu0 0
    %155 = vmatprep.subr.bf16.mxu0 0
    %156 = vmatpush1.bf16.msra.mxu0 0
    %157 = vmatprep.mubr.bf16.mxu0 0
    %158 = vmatmul.mubr.bf16.gmra.mrb[0].mxu0 %v41
    %v159 = vpop.f32.mrb[0].mxu0
    %v160 = vadd.f32 0.0, %v159
    %v161 = vpop.f32.mrb[0].mxu0
    %v162 = vadd.f32 0.0, %v161
    %v163 = vpop.f32.mrb[0].mxu0
    %v164 = vadd.f32 0.0, %v163
    %v165 = vpop.f32.mrb[0].mxu0
    %v166 = vadd.f32 0.0, %v165
    %167 = vmatprep.mubr.bf16.mxu0 0
    %168 = vmatmul.mubr.bf16.gmra.mrb[0].mxu0 %v42
    %v169 = vpop.f32.mrb[0].mxu0
    %v170 = vadd.f32 0.0, %v169
    %v171 = vpop.f32.mrb[0].mxu0
    %v172 = vadd.f32 0.0, %v171
    %v173 = vpop.f32.mrb[0].mxu0
    %v174 = vadd.f32 0.0, %v173
    %v175 = vpop.f32.mrb[0].mxu0
    %v176 = vadd.f32 0.0, %v175
    %177 = vdwg.mxu0
    %v178 = vpack.c.bf16 %v164, %v160
    %v179 = vpack.c.bf16 %v166, %v162
    %v180 = vpack.c.bf16 %v174, %v170
    %v181 = vpack.c.bf16 %v176, %v172
    %v186 = vunpack.c.l.b16 %v178
    %v187 = vunpack.c.l.b16 %v179
    %v188 = vunpack.c.h.b16 %v178
    %v189 = vunpack.c.h.b16 %v179
    %v190 = vunpack.c.l.b16 %v180
    %v191 = vunpack.c.l.b16 %v181
    %v192 = vunpack.c.h.b16 %v180
    %v193 = vunpack.c.h.b16 %v181
    %v194 = vpack.c.b16 %v187, %v186
    %v195 = vpack.c.b16 %v189, %v188
    %v196 = vpack.c.b16 %v191, %v190
    %v197 = vpack.c.b16 %v193, %v192
    %202 = vst [vmem:[#allocation2] sm:$0xff] %v194
    %203 = vst [vmem:[#allocation2 + $0x8] sm:$0xff] %v195
    %204 = vst [vmem:[#allocation2 + $0x10] sm:$0xff] %v196
    %205 = vst [vmem:[#allocation2 + $0x18] sm:$0xff] %v197
    // Predicated region
    $region10: #{policy_and_value_forward.3} parent=1 // pred_check
      _
    $region11: #{policy_and_value_forward.3} parent=1 // pred_check_branch
      %207 = sbr.rel (0) target = $region13
    $region12: #{policy_and_value_forward.3} parent=1 // pred_region
      %s209 = ssub.s32 512, 512
      %210 = vsyncadd [#allocation3], %s209
      %s211 = sshll.u32 [#allocation2], 4
      %s212 = int_to_ptr.vmem [resolvable:$true] %s211
      %217 = dma.vmem_to_hbm [thread:$0]  %s212, 512, %s2, [#allocation3], 128, 128, 8
    $region13: #{policy_and_value_forward.3} parent=1 // pred_fallthru
      _
    // Predicated region
    $region14: #{policy_and_value_forward.3} parent=1 // pred_check
      _
    $region15: #{policy_and_value_forward.3} parent=1 // pred_check_branch
      %219 = sbr.rel (0) target = $region17
    $region16: #{policy_and_value_forward.3} parent=1 // pred_region
      %220 = dma.done [#allocation3], 512
    $region17: #{policy_and_value_forward.3} parent=1 // pred_fallthru
      _
    %221 = vsyncpa [#allocation3], 1

// kernel: policy_and_value_forward.2
$region0: #{policy_and_value_forward.2}
  #allocation0 [shape = 'u32[]', space=smem, size = 0x4, offset = 0x4, fixed_abs, tag = 'smem constant byte address 0x4 - core index']
  #allocation1 [shape = 'u32[144,128]{1,0:T(1,128)}', space=vmem, size = 0x12000, scoped, tag = 'internal scratch']
  #allocation2 [shape = 'f32[1,1]{1,0:T(1,128)S(6)}', space=smem, size = 0x200, scoped, tag = 'scoped memory for policy_and_value_forward.2']
  %s0 = inlined_call_operand.vmem [shape: bf16[32,128], index: 0, kind: input, shape index: {}]
  %s1 = inlined_call_operand.vmem [shape: bf16[32,128], index: 1, kind: input, shape index: {}]
  %s2 = inlined_call_operand.vmem [shape: bf16[128,128], index: 2, kind: input, shape index: {}]
  %s3 = inlined_call_operand.vmem [shape: f32[1,128], index: 3, kind: input, shape index: {}]
  %s4 = inlined_call_operand.vmem [shape: bf16[128,128], index: 4, kind: input, shape index: {}]
  %s5 = inlined_call_operand.vmem [shape: f32[1,128], index: 5, kind: input, shape index: {}]
  %s6 = inlined_call_operand.vmem [shape: bf16[128,128], index: 6, kind: input, shape index: {}]
  %s7 = inlined_call_operand.<no memory space> [shape: f32[1,1], index: 7, kind: input, shape index: {}]
  %s8 = inlined_call_operand.vmem [shape: bf16[32,128], index: 8, kind: output, shape index: {0}]
  %s9 = inlined_call_operand.vmem [shape: f32[32,128], index: 9, kind: output, shape index: {1}]
  %10 = xla_tuple %s8, %s9
  %s11 = sld [smem:[#allocation0]]
  $region50: #{policy_and_value_forward.2} parent=0
    _
  %s13 = ssub.s32 1, %s11
  %s14 = scalar_select 0, %s13, %s11
  %15 = sst [smem:[#allocation2]] %s7
  // Predicated region
  $region2: #{policy_and_value_forward.2} parent=0 // pred_check
    _
  $region3: #{policy_and_value_forward.2} parent=0 // pred_check_branch
    %17 = sbr.rel (0) target = $region5
  $region4: #{policy_and_value_forward.2} parent=0 // pred_region
    _
  $region5: #{policy_and_value_forward.2} parent=0 // pred_fallthru
    _
  // Predicated region
  $region6: #{policy_and_value_forward.2} parent=0 // pred_check
    _
  $region7: #{policy_and_value_forward.2} parent=0 // pred_check_branch
    %19 = sbr.rel (0) target = $region9
  $region8: #{policy_and_value_forward.2} parent=0 // pred_region
    _
  $region9: #{policy_and_value_forward.2} parent=0 // pred_fallthru
    _
  // Predicated region
  $region10: #{policy_and_value_forward.2} parent=0 // pred_check
    _
  $region11: #{policy_and_value_forward.2} parent=0 // pred_check_branch
    %21 = sbr.rel (0) target = $region13
  $region12: #{policy_and_value_forward.2} parent=0 // pred_region
    _
  $region13: #{policy_and_value_forward.2} parent=0 // pred_fallthru
    _
  // Predicated region
  $region14: #{policy_and_value_forward.2} parent=0 // pred_check
    _
  $region15: #{policy_and_value_forward.2} parent=0 // pred_check_branch
    %23 = sbr.rel (0) target = $region17
  $region16: #{policy_and_value_forward.2} parent=0 // pred_region
    _
  $region17: #{policy_and_value_forward.2} parent=0 // pred_fallthru
    _
  // Predicated region
  $region18: #{policy_and_value_forward.2} parent=0 // pred_check
    _
  $region19: #{policy_and_value_forward.2} parent=0 // pred_check_branch
    %25 = sbr.rel (0) target = $region21
  $region20: #{policy_and_value_forward.2} parent=0 // pred_region
    _
  $region21: #{policy_and_value_forward.2} parent=0 // pred_fallthru
    _
  // Predicated region
  $region22: #{policy_and_value_forward.2} parent=0 // pred_check
    _
  $region23: #{policy_and_value_forward.2} parent=0 // pred_check_branch
    %27 = sbr.rel (0) target = $region25
  $region24: #{policy_and_value_forward.2} parent=0 // pred_region
    _
  $region25: #{policy_and_value_forward.2} parent=0 // pred_fallthru
    _
  // Predicated region
  $region26: #{policy_and_value_forward.2} parent=0 // pred_check
    _
  $region27: #{policy_and_value_forward.2} parent=0 // pred_check_branch
    %29 = sbr.rel (0) target = $region29
  $region28: #{policy_and_value_forward.2} parent=0 // pred_region
    _
  $region29: #{policy_and_value_forward.2} parent=0 // pred_fallthru
    _
  // Predicated region
  $region30: #{policy_and_value_forward.2} parent=0 // pred_check
    _
  $region31: #{policy_and_value_forward.2} parent=0 // pred_check_branch
    %31 = sbr.rel (0) target = $region33
  $region32: #{policy_and_value_forward.2} parent=0 // pred_region
    _
  $region33: #{policy_and_value_forward.2} parent=0 // pred_fallthru
    _
  %v33 = vld [vmem:[%s0] sm:$0xf]
  %v34 = vld [vmem:[%s0 + $0x4] sm:$0xf]
  %v35 = vld [vmem:[%s0 + $0x8] sm:$0xf]
  %v36 = vld [vmem:[%s0 + $0xc] sm:$0xf]
  %v37 = vld [vmem:[%s2] sm:$0xf]
  %v38 = vld [vmem:[%s2 + $0x4] sm:$0xf]
  %v39 = vld [vmem:[%s2 + $0x8] sm:$0xf]
  %v40 = vld [vmem:[%s2 + $0xc] sm:$0xf]
  %v41 = vld [vmem:[%s2 + $0x10] sm:$0xf]
  %v42 = vld [vmem:[%s2 + $0x14] sm:$0xf]
  %v43 = vld [vmem:[%s2 + $0x18] sm:$0xf]
  %v44 = vld [vmem:[%s2 + $0x1c] sm:$0xf]
  %v45 = vld [vmem:[%s2 + $0x20] sm:$0xf]
  %v46 = vld [vmem:[%s2 + $0x24] sm:$0xf]
  %v47 = vld [vmem:[%s2 + $0x28] sm:$0xf]
  %v48 = vld [vmem:[%s2 + $0x2c] sm:$0xf]
  %v49 = vld [vmem:[%s2 + $0x30] sm:$0xf]
  %v50 = vld [vmem:[%s2 + $0x34] sm:$0xf]
  %v51 = vld [vmem:[%s2 + $0x38] sm:$0xf]
  %v52 = vld [vmem:[%s2 + $0x3c] sm:$0xf]
  %v53 = vld [vmem:[%s3] sm:$0x1]
  %v55 = vlaneseq
  %v56 = vshrl.u32 %v55, 7
  %v57 = vsub.s32 0, %v56
  %v58 = vrot.slane %v53, %v57
  %v64 = vunpack.c.l.b16 %v33
  %v65 = vunpack.c.l.b16 %v34
  %v66 = vunpack.c.l.b16 %v35
  %v67 = vunpack.c.l.b16 %v36
  %v68 = vpack.c.b16 %v65, %v64
  %v69 = vpack.c.b16 %v67, %v66
  %v88 = vunpack.c.l.b16 %v37
  %v89 = vunpack.c.l.b16 %v38
  %v90 = vunpack.c.l.b16 %v39
  %v91 = vunpack.c.l.b16 %v40
  %v92 = vunpack.c.l.b16 %v41
  %v93 = vunpack.c.l.b16 %v42
  %v94 = vunpack.c.l.b16 %v43
  %v95 = vunpack.c.l.b16 %v44
  %v96 = vunpack.c.l.b16 %v45
  %v97 = vunpack.c.l.b16 %v46
  %v98 = vunpack.c.l.b16 %v47
  %v99 = vunpack.c.l.b16 %v48
  %v100 = vunpack.c.l.b16 %v49
  %v101 = vunpack.c.l.b16 %v50
  %v102 = vunpack.c.l.b16 %v51
  %v103 = vunpack.c.l.b16 %v52
  %v104 = vpack.c.b16 %v89, %v88
  %v105 = vpack.c.b16 %v91, %v90
  %v106 = vpack.c.b16 %v93, %v92
  %v107 = vpack.c.b16 %v95, %v94
  %v108 = vpack.c.b16 %v97, %v96
  %v109 = vpack.c.b16 %v99, %v98
  %v110 = vpack.c.b16 %v101, %v100
  %v111 = vpack.c.b16 %v103, %v102
  %120 = vmatprep.subr.bf16.mxu0 0
  %121 = vmatpush1.bf16.msra.mxu0 %v104
  %122 = vmatprep.subr.bf16.mxu0 0
  %123 = vmatpush1.bf16.msra.mxu0 %v105
  %124 = vmatprep.subr.bf16.mxu0 0
  %125 = vmatpush1.bf16.msra.mxu0 %v106
  %126 = vmatprep.subr.bf16.mxu0 0
  %127 = vmatpush1.bf16.msra.mxu0 %v107
  %128 = vmatprep.subr.bf16.mxu0 0
  %129 = vmatpush1.bf16.msra.mxu0 %v108
  %130 = vmatprep.subr.bf16.mxu0 0
  %131 = vmatpush1.bf16.msra.mxu0 %v109
  %132 = vmatprep.subr.bf16.mxu0 0
  %133 = vmatpush1.bf16.msra.mxu0 %v110
  %134 = vmatprep.subr.bf16.mxu0 0
  %135 = vmatpush1.bf16.msra.mxu0 %v111
  %136 = vmatprep.subr.bf16.mxu0 0
  %137 = vmatpush1.bf16.msra.mxu0 0
  %138 = vmatprep.subr.bf16.mxu0 0
  %139 = vmatpush1.bf16.msra.mxu0 0
  %140 = vmatprep.subr.bf16.mxu0 0
  %141 = vmatpush1.bf16.msra.mxu0 0
  %142 = vmatprep.subr.bf16.mxu0 0
  %143 = vmatpush1.bf16.msra.mxu0 0
  %144 = vmatprep.subr.bf16.mxu0 0
  %145 = vmatpush1.bf16.msra.mxu0 0
  %146 = vmatprep.subr.bf16.mxu0 0
  %147 = vmatpush1.bf16.msra.mxu0 0
  %148 = vmatprep.subr.bf16.mxu0 0
  %149 = vmatpush1.bf16.msra.mxu0 0
  %150 = vmatprep.subr.bf16.mxu0 0
  %151 = vmatpush1.bf16.msra.mxu0 0
  %152 = vmatprep.mubr.bf16.mxu0 0
  %153 = vmatmul.mubr.bf16.gmra.mrb[0].mxu0 %v68
  %v154 = vpop.f32.mrb[0].mxu0
  %v155 = vadd.f32 %v58, %v154
  %v156 = vpop.f32.mrb[0].mxu0
  %v157 = vpop.f32.mrb[0].mxu0
  %v158 = vadd.f32 %v58, %v157
  %v159 = vpop.f32.mrb[0].mxu0
  %160 = vmatprep.mubr.bf16.mxu0 0
  %161 = vmatmul.mubr.bf16.gmra.mrb[0].mxu0 %v69
  %v162 = vpop.f32.mrb[0].mxu0
  %v163 = vadd.f32 %v58, %v162
  %v164 = vpop.f32.mrb[0].mxu0
  %v165 = vpop.f32.mrb[0].mxu0
  %v166 = vadd.f32 %v58, %v165
  %v167 = vpop.f32.mrb[0].mxu0
  %168 = vdwg.mxu0
  %v169 = vtanh.pop %v155
  %v170 = vtanh.pop %v158
  %v171 = vtanh.pop %v163
  %v172 = vtanh.pop %v166
  %v173 = vpack.c.bf16 %v170, %v169
  %v174 = vpack.c.bf16 %v172, %v171
  %v177 = vunpack.c.l.b16 %v173
  %v178 = vunpack.c.h.b16 %v173
  %v179 = vunpack.c.l.b16 %v174
  %v180 = vunpack.c.h.b16 %v174
  %v181 = vpack.c.b16 %v177, %v177
  %v182 = vpack.c.b16 %v178, %v178
  %v183 = vpack.c.b16 %v179, %v179
  %v184 = vpack.c.b16 %v180, %v180
  %189 = vst [vmem:[%s8] sm:$0xf] %v181
  %190 = vst [vmem:[%s8 + $0x4] sm:$0xf] %v182
  %191 = vst [vmem:[%s8 + $0x8] sm:$0xf] %v183
  %192 = vst [vmem:[%s8 + $0xc] sm:$0xf] %v184
  %v193 = vld [vmem:[%s1] sm:$0xf]
  %v194 = vld [vmem:[%s1 + $0x4] sm:$0xf]
  %v195 = vld [vmem:[%s1 + $0x8] sm:$0xf]
  %v196 = vld [vmem:[%s1 + $0xc] sm:$0xf]
  %v197 = vld [vmem:[%s4] sm:$0xf]
  %v198 = vld [vmem:[%s4 + $0x4] sm:$0xf]
  %v199 = vld [vmem:[%s4 + $0x8] sm:$0xf]
  %v200 = vld [vmem:[%s4 + $0xc] sm:$0xf]
  %v201 = vld [vmem:[%s4 + $0x10] sm:$0xf]
  %v202 = vld [vmem:[%s4 + $0x14] sm:$0xf]
  %v203 = vld [vmem:[%s4 + $0x18] sm:$0xf]
  %v204 = vld [vmem:[%s4 + $0x1c] sm:$0xf]
  %v205 = vld [vmem:[%s4 + $0x20] sm:$0xf]
  %v206 = vld [vmem:[%s4 + $0x24] sm:$0xf]
  %v207 = vld [vmem:[%s4 + $0x28] sm:$0xf]
  %v208 = vld [vmem:[%s4 + $0x2c] sm:$0xf]
  %v209 = vld [vmem:[%s4 + $0x30] sm:$0xf]
  %v210 = vld [vmem:[%s4 + $0x34] sm:$0xf]
  %v211 = vld [vmem:[%s4 + $0x38] sm:$0xf]
  %v212 = vld [vmem:[%s4 + $0x3c] sm:$0xf]
  %v213 = vld [vmem:[%s5] sm:$0x1]
  %v215 = vlaneseq
  %v216 = vshrl.u32 %v215, 7
  %v217 = vsub.s32 0, %v216
  %v218 = vrot.slane %v213, %v217
  %v224 = vunpack.c.l.b16 %v193
  %v225 = vunpack.c.l.b16 %v194
  %v226 = vunpack.c.l.b16 %v195
  %v227 = vunpack.c.l.b16 %v196
  %v228 = vpack.c.b16 %v225, %v224
  %v229 = vpack.c.b16 %v227, %v226
  %v248 = vunpack.c.l.b16 %v197
  %v249 = vunpack.c.l.b16 %v198
  %v250 = vunpack.c.l.b16 %v199
  %v251 = vunpack.c.l.b16 %v200
  %v252 = vunpack.c.l.b16 %v201
  %v253 = vunpack.c.l.b16 %v202
  %v254 = vunpack.c.l.b16 %v203
  %v255 = vunpack.c.l.b16 %v204
  %v256 = vunpack.c.l.b16 %v205
  %v257 = vunpack.c.l.b16 %v206
  %v258 = vunpack.c.l.b16 %v207
  %v259 = vunpack.c.l.b16 %v208
  %v260 = vunpack.c.l.b16 %v209
  %v261 = vunpack.c.l.b16 %v210
  %v262 = vunpack.c.l.b16 %v211
  %v263 = vunpack.c.l.b16 %v212
  %v264 = vpack.c.b16 %v249, %v248
  %v265 = vpack.c.b16 %v251, %v250
  %v266 = vpack.c.b16 %v253, %v252
  %v267 = vpack.c.b16 %v255, %v254
  %v268 = vpack.c.b16 %v257, %v256
  %v269 = vpack.c.b16 %v259, %v258
  %v270 = vpack.c.b16 %v261, %v260
  %v271 = vpack.c.b16 %v263, %v262
  %280 = vmatprep.subr.bf16.mxu0 0
  %281 = vmatpush1.bf16.msra.mxu0 %v264
  %282 = vmatprep.subr.bf16.mxu0 0
  %283 = vmatpush1.bf16.msra.mxu0 %v265
  %284 = vmatprep.subr.bf16.mxu0 0
  %285 = vmatpush1.bf16.msra.mxu0 %v266
  %286 = vmatprep.subr.bf16.mxu0 0
  %287 = vmatpush1.bf16.msra.mxu0 %v267
  %288 = vmatprep.subr.bf16.mxu0 0
  %289 = vmatpush1.bf16.msra.mxu0 %v268
  %290 = vmatprep.subr.bf16.mxu0 0
  %291 = vmatpush1.bf16.msra.mxu0 %v269
  %292 = vmatprep.subr.bf16.mxu0 0
  %293 = vmatpush1.bf16.msra.mxu0 %v270
  %294 = vmatprep.subr.bf16.mxu0 0
  %295 = vmatpush1.bf16.msra.mxu0 %v271
  %296 = vmatprep.subr.bf16.mxu0 0
  %297 = vmatpush1.bf16.msra.mxu0 0
  %298 = vmatprep.subr.bf16.mxu0 0
  %299 = vmatpush1.bf16.msra.mxu0 0
  %300 = vmatprep.subr.bf16.mxu0 0
  %301 = vmatpush1.bf16.msra.mxu0 0
  %302 = vmatprep.subr.bf16.mxu0 0
  %303 = vmatpush1.bf16.msra.mxu0 0
  %304 = vmatprep.subr.bf16.mxu0 0
  %305 = vmatpush1.bf16.msra.mxu0 0
  %306 = vmatprep.subr.bf16.mxu0 0
  %307 = vmatpush1.bf16.msra.mxu0 0
  %308 = vmatprep.subr.bf16.mxu0 0
  %309 = vmatpush1.bf16.msra.mxu0 0
  %310 = vmatprep.subr.bf16.mxu0 0
  %311 = vmatpush1.bf16.msra.mxu0 0
  %312 = vmatprep.mubr.bf16.mxu0 0
  %313 = vmatmul.mubr.bf16.gmra.mrb[0].mxu0 %v228
  %v314 = vpop.f32.mrb[0].mxu0
  %v315 = vadd.f32 %v218, %v314
  %v316 = vpop.f32.mrb[0].mxu0
  %v317 = vpop.f32.mrb[0].mxu0
  %v318 = vadd.f32 %v218, %v317
  %v319 = vpop.f32.mrb[0].mxu0
  %320 = vmatprep.mubr.bf16.mxu0 0
  %321 = vmatmul.mubr.bf16.gmra.mrb[0].mxu0 %v229
  %v322 = vpop.f32.mrb[0].mxu0
  %v323 = vadd.f32 %v218, %v322
  %v324 = vpop.f32.mrb[0].mxu0
  %v325 = vpop.f32.mrb[0].mxu0
  %v326 = vadd.f32 %v218, %v325
  %v327 = vpop.f32.mrb[0].mxu0
  %328 = vdwg.mxu0
  %v329 = vtanh.pop %v315
  %v330 = vtanh.pop %v318
  %v331 = vtanh.pop %v323
  %v332 = vtanh.pop %v326
  %v333 = vpack.c.bf16 %v330, %v329
  %v334 = vpack.c.bf16 %v332, %v331
  %v335 = vld [vmem:[%s6] sm:$0xf]
  %v336 = vld [vmem:[%s6 + $0x4] sm:$0xf]
  %v337 = vld [vmem:[%s6 + $0x8] sm:$0xf]
  %v338 = vld [vmem:[%s6 + $0xc] sm:$0xf]
  %v339 = vld [vmem:[%s6 + $0x10] sm:$0xf]
  %v340 = vld [vmem:[%s6 + $0x14] sm:$0xf]
  %v341 = vld [vmem:[%s6 + $0x18] sm:$0xf]
  %v342 = vld [vmem:[%s6 + $0x1c] sm:$0xf]
  %v343 = vld [vmem:[%s6 + $0x20] sm:$0xf]
  %v344 = vld [vmem:[%s6 + $0x24] sm:$0xf]
  %v345 = vld [vmem:[%s6 + $0x28] sm:$0xf]
  %v346 = vld [vmem:[%s6 + $0x2c] sm:$0xf]
  %v347 = vld [vmem:[%s6 + $0x30] sm:$0xf]
  %v348 = vld [vmem:[%s6 + $0x34] sm:$0xf]
  %v349 = vld [vmem:[%s6 + $0x38] sm:$0xf]
  %v350 = vld [vmem:[%s6 + $0x3c] sm:$0xf]
  %s351 = sld [smem:[#allocation2]]
  %v352 = vstv %s351
  %v369 = vunpack.c.l.b16 %v335
  %v370 = vunpack.c.l.b16 %v336
  %v371 = vunpack.c.l.b16 %v337
  %v372 = vunpack.c.l.b16 %v338
  %v373 = vunpack.c.l.b16 %v339
  %v374 = vunpack.c.l.b16 %v340
  %v375 = vunpack.c.l.b16 %v341
  %v376 = vunpack.c.l.b16 %v342
  %v377 = vunpack.c.l.b16 %v343
  %v378 = vunpack.c.l.b16 %v344
  %v379 = vunpack.c.l.b16 %v345
  %v380 = vunpack.c.l.b16 %v346
  %v381 = vunpack.c.l.b16 %v347
  %v382 = vunpack.c.l.b16 %v348
  %v383 = vunpack.c.l.b16 %v349
  %v384 = vunpack.c.l.b16 %v350
  %v385 = vpack.c.b16 %v370, %v369
  %v386 = vpack.c.b16 %v372, %v371
  %v387 = vpack.c.b16 %v374, %v373
  %v388 = vpack.c.b16 %v376, %v375
  %v389 = vpack.c.b16 %v378, %v377
  %v390 = vpack.c.b16 %v380, %v379
  %v391 = vpack.c.b16 %v382, %v381
  %v392 = vpack.c.b16 %v384, %v383
  %401 = vmatprep.subr.bf16.mxu0 0
  %402 = vmatpush1.bf16.msra.mxu0 %v385
  %403 = vmatprep.subr.bf16.mxu0 0
  %404 = vmatpush1.bf16.msra.mxu0 %v386
  %405 = vmatprep.subr.bf16.mxu0 0
  %406 = vmatpush1.bf16.msra.mxu0 %v387
  %407 = vmatprep.subr.bf16.mxu0 0
  %408 = vmatpush1.bf16.msra.mxu0 %v388
  %409 = vmatprep.subr.bf16.mxu0 0
  %410 = vmatpush1.bf16.msra.mxu0 %v389
  %411 = vmatprep.subr.bf16.mxu0 0
  %412 = vmatpush1.bf16.msra.mxu0 %v390
  %413 = vmatprep.subr.bf16.mxu0 0
  %414 = vmatpush1.bf16.msra.mxu0 %v391
  %415 = vmatprep.subr.bf16.mxu0 0
  %416 = vmatpush1.bf16.msra.mxu0 %v392
  %417 = vmatprep.subr.bf16.mxu0 0
  %418 = vmatpush1.bf16.msra.mxu0 0
  %419 = vmatprep.subr.bf16.mxu0 0
  %420 = vmatpush1.bf16.msra.mxu0 0
  %421 = vmatprep.subr.bf16.mxu0 0
  %422 = vmatpush1.bf16.msra.mxu0 0
  %423 = vmatprep.subr.bf16.mxu0 0
  %424 = vmatpush1.bf16.msra.mxu0 0
  %425 = vmatprep.subr.bf16.mxu0 0
  %426 = vmatpush1.bf16.msra.mxu0 0
  %427 = vmatprep.subr.bf16.mxu0 0
  %428 = vmatpush1.bf16.msra.mxu0 0
  %429 = vmatprep.subr.bf16.mxu0 0
  %430 = vmatpush1.bf16.msra.mxu0 0
  %431 = vmatprep.subr.bf16.mxu0 0
  %432 = vmatpush1.bf16.msra.mxu0 0
  %433 = vmatprep.mubr.bf16.mxu0 0
  %434 = vmatmul.mubr.bf16.gmra.mrb[0].mxu0 %v333
  %v435 = vpop.f32.mrb[0].mxu0
  %v436 = vadd.f32 %v352, %v435
  %v437 = vpop.f32.mrb[0].mxu0
  %v438 = vpop.f32.mrb[0].mxu0
  %v439 = vadd.f32 %v352, %v438
  %v440 = vpop.f32.mrb[0].mxu0
  %441 = vmatprep.mubr.bf16.mxu0 0
  %442 = vmatmul.mubr.bf16.gmra.mrb[0].mxu0 %v334
  %v443 = vpop.f32.mrb[0].mxu0
  %v444 = vadd.f32 %v352, %v443
  %v445 = vpop.f32.mrb[0].mxu0
  %v446 = vpop.f32.mrb[0].mxu0
  %v447 = vadd.f32 %v352, %v446
  %v448 = vpop.f32.mrb[0].mxu0
  %449 = vdwg.mxu0
  %450 = vst [vmem:[%s9] sm:$0xff] %v436
  %451 = vst [vmem:[%s9 + $0x8] sm:$0xff] %v439
  %452 = vst [vmem:[%s9 + $0x10] sm:$0xff] %v444
  %453 = vst [vmem:[%s9 + $0x18] sm:$0xff] %v447
  // Predicated region
  $region34: #{policy_and_value_forward.2} parent=0 // pred_check
    _
  $region35: #{policy_and_value_forward.2} parent=0 // pred_check_branch
    %455 = sbr.rel (0) target = $region37
  $region36: #{policy_and_value_forward.2} parent=0 // pred_region
    _
  $region37: #{policy_and_value_forward.2} parent=0 // pred_fallthru
    _
  // Predicated region
  $region38: #{policy_and_value_forward.2} parent=0 // pred_check
    _
  $region39: #{policy_and_value_forward.2} parent=0 // pred_check_branch
    %457 = sbr.rel (0) target = $region41
  $region40: #{policy_and_value_forward.2} parent=0 // pred_region
    _
  $region41: #{policy_and_value_forward.2} parent=0 // pred_fallthru
    _
  // Predicated region
  $region42: #{policy_and_value_forward.2} parent=0 // pred_check
    _
  $region43: #{policy_and_value_forward.2} parent=0 // pred_check_branch
    %459 = sbr.rel (0) target = $region45
  $region44: #{policy_and_value_forward.2} parent=0 // pred_region
    _
  $region45: #{policy_and_value_forward.2} parent=0 // pred_fallthru
    _
  // Predicated region
  $region46: #{policy_and_value_forward.2} parent=0 // pred_check
    _
  $region47: #{policy_and_value_forward.2} parent=0 // pred_check_branch
    %461 = sbr.rel (0) target = $region49
  $region48: #{policy_and_value_forward.2} parent=0 // pred_region
    _
  $region49: #{policy_and_value_forward.2} parent=0 // pred_fallthru
    _

</llo_original>
